<compile_context>
chip_gen: v7x
topology: tpu7x:2x2x1
jax: 0.10.0
libtpu: 0.0.40
codegen_flags: <defaults>
</compile_context>

<pallas_src>
import functools

import jax
import jax.numpy as jnp
from jax.experimental import pallas as pl
from jax.experimental.pallas import tpu as pltpu


def _round_up(x, m):
    return ((x + m - 1) // m) * m


def _policy_kernel(x_ref, w12_ref, b12_ref, w3_ref, b3_ref, w4_ref, b4_ref,
                   out_ref, *, hidden_pad, action_dim):
    neg_slope = jnp.float32(0.01)  # PyTorch nn.LeakyReLU default

    # Fused state/condition embedding: one block-diagonal matmul.
    # bf16 operands on the MXU, f32 accumulation; bias add + LeakyReLU in f32.
    z = jnp.dot(x_ref[...], w12_ref[...],
                preferred_element_type=jnp.float32) + b12_ref[...]
    z = jnp.where(z > 0, z, neg_slope * z)
    s = z[:, :hidden_pad]          # padded hidden lanes are exactly 0
    r = z[:, hidden_pad:]          # padded hidden lanes are exactly 0

    # fc: Linear -> Tanh -> Linear -> Softmax(dim=1)
    sr = (s * r).astype(w3_ref.dtype)
    h = jnp.tanh(jnp.dot(sr, w3_ref[...],
                         preferred_element_type=jnp.float32) + b3_ref[...])

    logits = jnp.dot(h.astype(w4_ref.dtype), w4_ref[...],
                     preferred_element_type=jnp.float32) + b4_ref[...]

    # Mask padded action lanes so they contribute exp(...) == 0 to the softmax.
    lane = jax.lax.broadcasted_iota(jnp.int32, logits.shape, 1)
    logits = jnp.where(lane < action_dim, logits, jnp.float32(-1e30))

    m = jnp.max(logits, axis=1, keepdims=True)
    e = jnp.exp(logits - m)
    denom = jnp.sum(e, axis=1, keepdims=True)
    out_ref[...] = (e * pl.reciprocal(denom, approx=True)).astype(out_ref.dtype)


def policy_net_forward(state, desired_return, horizon, scaling_factor, params,
                       *, batch_tile=256):
    """Pure-JAX wrapper around the Pallas kernel.

    state:          [B, state_dim]    float
    desired_return: [B, reward_dim]   float
    horizon:        [B, 1]            float
    scaling_factor: [1, reward_dim+1] float (broadcasts over batch)
    params: dict with w1,b1,w2,b2,w3,b3,w4,b4 (weights are [in, out], biases [1, out])
    """
    state = state.astype(jnp.float32)
    desired_return = desired_return.astype(jnp.float32)
    horizon = horizon.astype(jnp.float32)

    w1, b1 = params["w1"], params["b1"]
    w2, b2 = params["w2"], params["b2"]
    w3, b3 = params["w3"], params["b3"]
    w4, b4 = params["w4"], params["b4"]

    state_dim = w1.shape[0]
    cond_dim = w2.shape[0]          # reward_dim + 1
    hidden_dim = w1.shape[1]
    action_dim = w4.shape[1]

    HP = _round_up(hidden_dim, 128)   # lane-padded hidden width
    AP = _round_up(action_dim, 128)   # lane-padded action width (lane-dense out)
    Fin = state_dim + cond_dim

    # Fold scaling_factor into W2:  (c * sf) @ W2  ==  c @ (diag(sf) @ W2).
    w2s = scaling_factor.reshape(-1, 1).astype(jnp.float32) * w2

    # Block-diagonal fused input projection, each half zero-padded to HP lanes.
    w12 = jnp.zeros((Fin, 2 * HP), jnp.float32)
    w12 = w12.at[:state_dim, :hidden_dim].set(w1)
    w12 = w12.at[state_dim:, HP:HP + hidden_dim].set(w2s)
    b12 = jnp.zeros((1, 2 * HP), jnp.float32)
    b12 = b12.at[:, :hidden_dim].set(b1)
    b12 = b12.at[:, HP:HP + hidden_dim].set(b2)

    w3p = jnp.zeros((HP, HP), jnp.float32).at[:hidden_dim, :hidden_dim].set(w3)
    b3p = jnp.zeros((1, HP), jnp.float32).at[:, :hidden_dim].set(b3)
    w4p = jnp.zeros((HP, AP), jnp.float32).at[:hidden_dim, :action_dim].set(w4)
    b4p = jnp.zeros((1, AP), jnp.float32).at[:, :action_dim].set(b4)

    # Concatenated activations: [state | desired_return | horizon].
    x = jnp.concatenate([state, desired_return, horizon], axis=1)

    # Batch tiling: TB multiple of 8; pad B up to a multiple of TB (padded rows
    # compute garbage independently per-row and are sliced away below).
    B = x.shape[0]
    TB = batch_tile if B >= batch_tile else max(8, _round_up(B, 8))
    Bp = _round_up(B, TB)
    if Bp != B:
        x = jnp.pad(x, ((0, Bp - B), (0, 0)))

    # bf16 into the MXU; biases stay f32 (added to the f32 accumulator).
    x_bf = x.astype(jnp.bfloat16)
    w12_bf = w12.astype(jnp.bfloat16)
    w3_bf = w3p.astype(jnp.bfloat16)
    w4_bf = w4p.astype(jnp.bfloat16)

    kernel = functools.partial(_policy_kernel,
                               hidden_pad=HP, action_dim=action_dim)

    out = pl.pallas_call(
        kernel,
        out_shape=jax.ShapeDtypeStruct((Bp, AP), jnp.float32),
        grid=(Bp // TB,),
        in_specs=[
            pl.BlockSpec((TB, Fin), lambda i: (i, 0)),       # activations tile
            pl.BlockSpec((Fin, 2 * HP), lambda i: (0, 0)),   # fused W12 (resident)
            pl.BlockSpec((1, 2 * HP), lambda i: (0, 0)),     # fused bias
            pl.BlockSpec((HP, HP), lambda i: (0, 0)),        # W3
            pl.BlockSpec((1, HP), lambda i: (0, 0)),         # b3
            pl.BlockSpec((HP, AP), lambda i: (0, 0)),        # W4
            pl.BlockSpec((1, AP), lambda i: (0, 0)),         # b4
        ],
        out_specs=pl.BlockSpec((TB, AP), lambda i: (i, 0)),  # lane-dense output
        compiler_params=pltpu.CompilerParams(
            dimension_semantics=("parallel",),               # v7x: 2 TCs split batch
        ),
    )(x_bf, w12_bf, b12, w3_bf, b3p, w4_bf, b4p)

    return out[:B, :action_dim]


def init_params(key, state_dim, reward_dim, action_dim, hidden_dim):
    """Deterministic synthetic parameter init (PyTorch-Linear-like uniform)."""
    def linear(key, fan_in, fan_out):
        k1, k2 = jax.random.split(key)
        bound = 1.0 / jnp.sqrt(jnp.float32(fan_in))
        w = jax.random.uniform(k1, (fan_in, fan_out), jnp.float32, -bound, bound)
        b = jax.random.uniform(k2, (1, fan_out), jnp.float32, -bound, bound)
        return w, b

    k1, k2, k3, k4 = jax.random.split(key, 4)
    w1, b1 = linear(k1, state_dim, hidden_dim)
    w2, b2 = linear(k2, reward_dim + 1, hidden_dim)
    w3, b3 = linear(k3, hidden_dim, hidden_dim)
    w4, b4 = linear(k4, hidden_dim, action_dim)
    return dict(w1=w1, b1=b1, w2=w2, b2=b2, w3=w3, b3=b3, w4=w4, b4=b4)


def _reference_forward(state, desired_return, horizon, scaling_factor, p):
    """Plain-JAX f32 reference mirroring the PyTorch forward."""
    def leaky(x):
        return jnp.where(x > 0, x, 0.01 * x)
    s = leaky(state @ p["w1"] + p["b1"])
    c = jnp.concatenate([desired_return, horizon], axis=1) * scaling_factor
    r = leaky(c @ p["w2"] + p["b2"])
    h = jnp.tanh((s * r) @ p["w3"] + p["b3"])
    logits = h @ p["w4"] + p["b4"]
    return jax.nn.softmax(logits, axis=1)


if __name__ == "__main__":
    # Small shapes consistent with the module's forward (hidden_dim=64 default).
    B, state_dim, reward_dim, action_dim, hidden_dim = 8, 16, 3, 4, 64

    key = jax.random.PRNGKey(0)
    k_p, k_s, k_r, k_h = jax.random.split(key, 4)

    params = init_params(k_p, state_dim, reward_dim, action_dim, hidden_dim)
    state = jax.random.normal(k_s, (B, state_dim), jnp.float32)
    desired_return = jax.random.normal(k_r, (B, reward_dim), jnp.float32)
    horizon = jax.random.uniform(k_h, (B, 1), jnp.float32, 1.0, 50.0)
    scaling_factor = jnp.array([[0.1, 0.1, 0.1, 0.01]], dtype=jnp.float32)

    pred = policy_net_forward(state, desired_return, horizon,
                              scaling_factor, params)
    pred = jax.block_until_ready(pred)

    ref = _reference_forward(state, desired_return, horizon,
                             scaling_factor, params)
    assert pred.shape == (B, action_dim)
    # Tolerances loosened for bf16 MXU inputs + approx reciprocal.
    assert jnp.allclose(jnp.sum(pred, axis=1), 1.0, atol=1e-2)
    assert jnp.allclose(pred, ref, atol=3e-2, rtol=3e-2)

    print("KERNEL_OK")
</pallas_src>

<mosaic_0001>
module attributes {stable_mosaic.version = 11 : i64} {
  func.func @_policy_kernel(%arg0: i32, %arg1: memref<8x20xbf16, #tpu.memory_space<vmem>>, %arg2: memref<20x256xbf16, #tpu.memory_space<vmem>>, %arg3: memref<1x256xf32, #tpu.memory_space<vmem>>, %arg4: memref<128x128xbf16, #tpu.memory_space<vmem>>, %arg5: memref<1x128xf32, #tpu.memory_space<vmem>>, %arg6: memref<128x128xbf16, #tpu.memory_space<vmem>>, %arg7: memref<1x128xf32, #tpu.memory_space<vmem>>, %arg8: memref<8x128xf32, #tpu.memory_space<vmem>>) attributes {dimension_semantics = [#tpu.dimension_semantics<parallel>], iteration_bounds = array<i64: 1>, scalar_prefetch = 0 : i64, scratch_operands = 0 : i64, tpu.core_type = #tpu.core_type<tc>, window_params = [{transform_indices = @transform_0, window_bounds = array<i64: 8, 20>}, {pipeline_mode = #tpu.pipeline_mode<synchronous>, transform_indices = @transform_1, window_bounds = array<i64: 20, 256>}, {pipeline_mode = #tpu.pipeline_mode<synchronous>, transform_indices = @transform_2, window_bounds = array<i64: 1, 256>}, {pipeline_mode = #tpu.pipeline_mode<synchronous>, transform_indices = @transform_3, window_bounds = array<i64: 128, 128>}, {pipeline_mode = #tpu.pipeline_mode<synchronous>, transform_indices = @transform_4, window_bounds = array<i64: 1, 128>}, {pipeline_mode = #tpu.pipeline_mode<synchronous>, transform_indices = @transform_5, window_bounds = array<i64: 128, 128>}, {pipeline_mode = #tpu.pipeline_mode<synchronous>, transform_indices = @transform_6, window_bounds = array<i64: 1, 128>}, {transform_indices = @transform_7, window_bounds = array<i64: 8, 128>}]} {
    %c0 = arith.constant 0 : index
    %c0_0 = arith.constant 0 : index
    %0 = vector.load %arg1[%c0, %c0_0] : memref<8x20xbf16, #tpu.memory_space<vmem>>, vector<8x20xbf16>
    %c0_1 = arith.constant 0 : index
    %c0_2 = arith.constant 0 : index
    %1 = vector.load %arg2[%c0_1, %c0_2] : memref<20x256xbf16, #tpu.memory_space<vmem>>, vector<20x256xbf16>
    %cst = arith.constant dense<0.000000e+00> : vector<8x256xf32>
    %2 = tpu.matmul %0, %1, %cst {dimension_numbers = #tpu.dot_dimension_numbers<[1], [0], [0], [1], [0, 0, 1, 1], [], []>} : vector<8x20xbf16>, vector<20x256xbf16>, vector<8x256xf32> -> vector<8x256xf32>
    %c0_3 = arith.constant 0 : index
    %c0_4 = arith.constant 0 : index
    %3 = vector.load %arg3[%c0_3, %c0_4] : memref<1x256xf32, #tpu.memory_space<vmem>>, vector<1x256xf32>
    %4 = vector.broadcast %3 : vector<1x256xf32> to vector<8x256xf32>
    %5 = arith.addf %2, %4 : vector<8x256xf32>
    %cst_5 = arith.constant 0.000000e+00 : f32
    %6 = vector.broadcast %cst_5 : f32 to vector<8x256xf32>
    %7 = arith.cmpf ogt, %5, %6 : vector<8x256xf32>
    %cst_6 = arith.constant 0.00999999977 : f32
    %8 = vector.broadcast %cst_6 : f32 to vector<8x256xf32>
    %9 = arith.mulf %8, %5 : vector<8x256xf32>
    %10 = arith.select %7, %5, %9 : vector<8x256xi1>, vector<8x256xf32>
    %11 = vector.extract_strided_slice %10 {offsets = [0, 0], sizes = [8, 128], strides = [1, 1]} : vector<8x256xf32> to vector<8x128xf32>
    %12 = vector.extract_strided_slice %10 {offsets = [0, 128], sizes = [8, 128], strides = [1, 1]} : vector<8x256xf32> to vector<8x128xf32>
    %13 = arith.mulf %11, %12 : vector<8x128xf32>
    %14 = arith.truncf %13 : vector<8x128xf32> to vector<8x128xbf16>
    %c0_7 = arith.constant 0 : index
    %c0_8 = arith.constant 0 : index
    %15 = vector.load %arg4[%c0_7, %c0_8] : memref<128x128xbf16, #tpu.memory_space<vmem>>, vector<128x128xbf16>
    %cst_9 = arith.constant dense<0.000000e+00> : vector<8x128xf32>
    %16 = tpu.matmul %14, %15, %cst_9 {dimension_numbers = #tpu.dot_dimension_numbers<[1], [0], [0], [1], [0, 0, 1, 1], [], []>} : vector<8x128xbf16>, vector<128x128xbf16>, vector<8x128xf32> -> vector<8x128xf32>
    %c0_10 = arith.constant 0 : index
    %c0_11 = arith.constant 0 : index
    %17 = vector.load %arg5[%c0_10, %c0_11] : memref<1x128xf32, #tpu.memory_space<vmem>>, vector<1x128xf32>
    %18 = vector.broadcast %17 : vector<1x128xf32> to vector<8x128xf32>
    %19 = arith.addf %16, %18 : vector<8x128xf32>
    %20 = math.tanh %19 : vector<8x128xf32>
    %21 = arith.truncf %20 : vector<8x128xf32> to vector<8x128xbf16>
    %c0_12 = arith.constant 0 : index
    %c0_13 = arith.constant 0 : index
    %22 = vector.load %arg6[%c0_12, %c0_13] : memref<128x128xbf16, #tpu.memory_space<vmem>>, vector<128x128xbf16>
    %cst_14 = arith.constant dense<0.000000e+00> : vector<8x128xf32>
    %23 = tpu.matmul %21, %22, %cst_14 {dimension_numbers = #tpu.dot_dimension_numbers<[1], [0], [0], [1], [0, 0, 1, 1], [], []>} : vector<8x128xbf16>, vector<128x128xbf16>, vector<8x128xf32> -> vector<8x128xf32>
    %c0_15 = arith.constant 0 : index
    %c0_16 = arith.constant 0 : index
    %24 = vector.load %arg7[%c0_15, %c0_16] : memref<1x128xf32, #tpu.memory_space<vmem>>, vector<1x128xf32>
    %25 = vector.broadcast %24 : vector<1x128xf32> to vector<8x128xf32>
    %26 = arith.addf %23, %25 : vector<8x128xf32>
    %27 = tpu.iota {dimensions = array<i32: 1>} : vector<8x128xi32>
    %c4_i32 = arith.constant 4 : i32
    %28 = vector.broadcast %c4_i32 : i32 to vector<8x128xi32>
    %29 = arith.cmpi slt, %27, %28 : vector<8x128xi32>
    %cst_17 = arith.constant -1.000000e+30 : f32
    %30 = vector.broadcast %cst_17 : f32 to vector<8x128xf32>
    %31 = arith.select %29, %26, %30 : vector<8x128xi1>, vector<8x128xf32>
    %cst_18 = arith.constant dense<0xFF800000> : vector<8xf32>
    %32 = vector.multi_reduction <maximumf>, %31, %cst_18 [1] : vector<8x128xf32> to vector<8xf32>
    %33 = vector.shape_cast %32 : vector<8xf32> to vector<8x1xf32>
    %34 = vector.broadcast %33 : vector<8x1xf32> to vector<8x128xf32>
    %35 = arith.subf %31, %34 : vector<8x128xf32>
    %36 = math.exp %35 : vector<8x128xf32>
    %cst_19 = arith.constant dense<0.000000e+00> : vector<8xf32>
    %37 = vector.multi_reduction <add>, %36, %cst_19 [1] : vector<8x128xf32> to vector<8xf32>
    %38 = vector.shape_cast %37 : vector<8xf32> to vector<8x1xf32>
    %39 = tpu.reciprocal %38 {approx = true} : vector<8x1xf32> -> vector<8x1xf32>
    %40 = vector.broadcast %39 : vector<8x1xf32> to vector<8x128xf32>
    %41 = arith.mulf %36, %40 : vector<8x128xf32>
    %c0_20 = arith.constant 0 : index
    %c0_21 = arith.constant 0 : index
    %42 = vector.load %arg8[%c0_20, %c0_21] : memref<8x128xf32, #tpu.memory_space<vmem>>, vector<8x128xf32>
    tpu.vector_store %arg8[%c0_20, %c0_21], %41 {strides = array<i32>} : memref<8x128xf32, #tpu.memory_space<vmem>>, vector<8x128xf32>,
    return
  }
  func.func @transform_0(%arg0: i32) -> (i32, i32) {
    %c0_i32 = arith.constant 0 : i32
    %c0_i32_0 = arith.constant 0 : i32
    return %arg0, %c0_i32 : i32, i32
  }
  func.func @transform_1(%arg0: i32) -> (i32, i32) {
    %c0_i32 = arith.constant 0 : i32
    %c0_i32_0 = arith.constant 0 : i32
    %c0_i32_1 = arith.constant 0 : i32
    return %c0_i32, %c0_i32_0 : i32, i32
  }
  func.func @transform_2(%arg0: i32) -> (i32, i32) {
    %c0_i32 = arith.constant 0 : i32
    %c0_i32_0 = arith.constant 0 : i32
    %c0_i32_1 = arith.constant 0 : i32
    return %c0_i32, %c0_i32_0 : i32, i32
  }
  func.func @transform_3(%arg0: i32) -> (i32, i32) {
    %c0_i32 = arith.constant 0 : i32
    %c0_i32_0 = arith.constant 0 : i32
    %c0_i32_1 = arith.constant 0 : i32
    return %c0_i32, %c0_i32_0 : i32, i32
  }
  func.func @transform_4(%arg0: i32) -> (i32, i32) {
    %c0_i32 = arith.constant 0 : i32
    %c0_i32_0 = arith.constant 0 : i32
    %c0_i32_1 = arith.constant 0 : i32
    return %c0_i32, %c0_i32_0 : i32, i32
  }
  func.func @transform_5(%arg0: i32) -> (i32, i32) {
    %c0_i32 = arith.constant 0 : i32
    %c0_i32_0 = arith.constant 0 : i32
    %c0_i32_1 = arith.constant 0 : i32
    return %c0_i32, %c0_i32_0 : i32, i32
  }
  func.func @transform_6(%arg0: i32) -> (i32, i32) {
    %c0_i32 = arith.constant 0 : i32
    %c0_i32_0 = arith.constant 0 : i32
    %c0_i32_1 = arith.constant 0 : i32
    return %c0_i32, %c0_i32_0 : i32, i32
  }
  func.func @transform_7(%arg0: i32) -> (i32, i32) {
    %c0_i32 = arith.constant 0 : i32
    %c0_i32_0 = arith.constant 0 : i32
    return %arg0, %c0_i32 : i32, i32
  }
}

</mosaic_0001>

<llo_original>
// kernel: tpu_custom_call.1
$region0: #{tpu_custom_call.1}
  #allocation0 [shape = 'u32[]', space=smem, size = 0x4, offset = 0x4, fixed_abs, tag = 'smem constant byte address 0x4 - core index']
  #allocation1 [shape = 'u32[144,128]{1,0:T(1,128)}', space=vmem, size = 0x12000, scoped, tag = 'internal scratch']
  %s0 = inlined_call_operand.hbm [shape: bf16[8,20], index: 0, kind: input, shape index: {}]
  %s1 = inlined_call_operand.hbm [shape: bf16[20,256], index: 1, kind: input, shape index: {}]
  %s2 = inlined_call_operand.vmem [shape: f32[1,256], index: 2, kind: input, shape index: {}]
  %s3 = inlined_call_operand.hbm [shape: bf16[128,128], index: 3, kind: input, shape index: {}]
  %s4 = inlined_call_operand.vmem [shape: f32[1,128], index: 4, kind: input, shape index: {}]
  %s5 = inlined_call_operand.hbm [shape: bf16[128,128], index: 5, kind: input, shape index: {}]
  %s6 = inlined_call_operand.vmem [shape: f32[1,128], index: 6, kind: input, shape index: {}]
  %s7 = inlined_call_operand.hbm [shape: f32[8,128], index: 7, kind: output, shape index: {}]
  %s8 = sld [smem:[#allocation0]]
  $region54: #{tpu_custom_call.1} parent=0
    _
  %s10 = ssub.s32 1, %s8
  %s11 = scalar_select 0, %s10, %s8
  $region1: #{tpu_custom_call.1} parent=0
    #allocation2 [shape = 'u8[2048]{0}', space=vmem, size = 0x800, scoped, tag = 'input window, operand 0, single buffered']
    #allocation3 [shape = 's32[1]{0}', space=sflag, size = 0x4, scoped, tag = 'scoped memory for tpu_custom_call.1']
    #allocation4 [shape = 's32[1]{0}', space=sflag, size = 0x4, scoped, tag = 'scoped memory for tpu_custom_call.1']
    #allocation5 [shape = 'u8[12288]{0}', space=vmem, size = 0x3000, scoped, tag = 'input window, operand 1, single buffered']
    #allocation6 [shape = 's32[1]{0}', space=sflag, size = 0x4, scoped, tag = 'scoped memory for tpu_custom_call.1']
    #allocation7 [shape = 'u8[32768]{0}', space=vmem, size = 0x8000, scoped, tag = 'input window, operand 3, single buffered']
    #allocation8 [shape = 'u8[32768]{0}', space=vmem, size = 0x8000, scoped, tag = 'input window, operand 5, single buffered']
    #allocation9 [shape = 's32[1]{0}', space=sflag, size = 0x4, scoped, tag = 'scoped memory for tpu_custom_call.1']
    #allocation10 [shape = 'u8[4096]{0}', space=vmem, size = 0x1000, scoped, tag = 'output window, operand 0, single buffered']
    %12 = vsyncpa [#allocation3], 0
    %13 = vsyncpa [#allocation6], 0
    %14 = vsyncpa [#allocation9], 0
    %15 = vsyncpa [#allocation4], 0
    // Predicated region
    $region2: #{tpu_custom_call.1} parent=1 // pred_check
      _
    $region3: #{tpu_custom_call.1} parent=1 // pred_check_branch
      %17 = sbr.rel (0) target = $region5
    $region4: #{tpu_custom_call.1} parent=1 // pred_region
      %s19 = ssub.s32 64, 64
      %20 = vsyncadd [#allocation3], %s19
      %s22 = sshll.u32 [#allocation2], 4
      %s23 = int_to_ptr.vmem [resolvable:$true] %s22
      %25 = dma.hbm_to_vmem [thread:$0]  %s0, 64, %s23, [#allocation3]
    $region5: #{tpu_custom_call.1} parent=1 // pred_fallthru
      _
    // Predicated region
    $region6: #{tpu_custom_call.1} parent=1 // pred_check
      _
    $region7: #{tpu_custom_call.1} parent=1 // pred_check_branch
      %27 = sbr.rel (0) target = $region9
    $region8: #{tpu_custom_call.1} parent=1 // pred_region
      %s29 = ssub.s32 384, 384
      %30 = vsyncadd [#allocation6], %s29
      %s31 = sshll.u32 [#allocation5], 4
      %s32 = int_to_ptr.vmem [resolvable:$true] %s31
      %37 = dma.hbm_to_vmem [thread:$0]  %s1, 384, %s32, [#allocation6], 128, 128, 8
    $region9: #{tpu_custom_call.1} parent=1 // pred_fallthru
      _
    // Predicated region
    $region10: #{tpu_custom_call.1} parent=1 // pred_check
      _
    $region11: #{tpu_custom_call.1} parent=1 // pred_check_branch
      %39 = sbr.rel (0) target = $region13
    $region12: #{tpu_custom_call.1} parent=1 // pred_region
      _
    $region13: #{tpu_custom_call.1} parent=1 // pred_fallthru
      _
    // Predicated region
    $region14: #{tpu_custom_call.1} parent=1 // pred_check
      _
    $region15: #{tpu_custom_call.1} parent=1 // pred_check_branch
      %41 = sbr.rel (0) target = $region17
    $region16: #{tpu_custom_call.1} parent=1 // pred_region
      %s43 = ssub.s32 1024, 1024
      %44 = vsyncadd [#allocation6], %s43
      %s45 = sshll.u32 [#allocation7], 4
      %s46 = int_to_ptr.vmem [resolvable:$true] %s45
      %51 = dma.hbm_to_vmem [thread:$0]  %s3, 1024, %s46, [#allocation6], 64, 64, 4
    $region17: #{tpu_custom_call.1} parent=1 // pred_fallthru
      _
    // Predicated region
    $region18: #{tpu_custom_call.1} parent=1 // pred_check
      _
    $region19: #{tpu_custom_call.1} parent=1 // pred_check_branch
      %53 = sbr.rel (0) target = $region21
    $region20: #{tpu_custom_call.1} parent=1 // pred_region
      _
    $region21: #{tpu_custom_call.1} parent=1 // pred_fallthru
      _
    // Predicated region
    $region22: #{tpu_custom_call.1} parent=1 // pred_check
      _
    $region23: #{tpu_custom_call.1} parent=1 // pred_check_branch
      %55 = sbr.rel (0) target = $region25
    $region24: #{tpu_custom_call.1} parent=1 // pred_region
      %s57 = ssub.s32 1024, 1024
      %58 = vsyncadd [#allocation9], %s57
      %s59 = sshll.u32 [#allocation8], 4
      %s60 = int_to_ptr.vmem [resolvable:$true] %s59
      %65 = dma.hbm_to_vmem [thread:$0]  %s5, 1024, %s60, [#allocation9], 64, 64, 4
    $region25: #{tpu_custom_call.1} parent=1 // pred_fallthru
      _
    // Predicated region
    $region26: #{tpu_custom_call.1} parent=1 // pred_check
      _
    $region27: #{tpu_custom_call.1} parent=1 // pred_check_branch
      %67 = sbr.rel (0) target = $region29
    $region28: #{tpu_custom_call.1} parent=1 // pred_region
      _
    $region29: #{tpu_custom_call.1} parent=1 // pred_fallthru
      _
    // Predicated region
    $region30: #{tpu_custom_call.1} parent=1 // pred_check
      _
    $region31: #{tpu_custom_call.1} parent=1 // pred_check_branch
      %69 = sbr.rel (0) target = $region33
    $region32: #{tpu_custom_call.1} parent=1 // pred_region
      %70 = dma.done [#allocation3], 64
    $region33: #{tpu_custom_call.1} parent=1 // pred_fallthru
      _
    // Predicated region
    $region34: #{tpu_custom_call.1} parent=1 // pred_check
      _
    $region35: #{tpu_custom_call.1} parent=1 // pred_check_branch
      %72 = sbr.rel (0) target = $region37
    $region36: #{tpu_custom_call.1} parent=1 // pred_region
      %73 = dma.done [#allocation6], 384
    $region37: #{tpu_custom_call.1} parent=1 // pred_fallthru
      _
    // Predicated region
    $region38: #{tpu_custom_call.1} parent=1 // pred_check
      _
    $region39: #{tpu_custom_call.1} parent=1 // pred_check_branch
      %75 = sbr.rel (0) target = $region41
    $region40: #{tpu_custom_call.1} parent=1 // pred_region
      %76 = dma.done [#allocation6], 1024
    $region41: #{tpu_custom_call.1} parent=1 // pred_fallthru
      _
    // Predicated region
    $region42: #{tpu_custom_call.1} parent=1 // pred_check
      _
    $region43: #{tpu_custom_call.1} parent=1 // pred_check_branch
      %78 = sbr.rel (0) target = $region45
    $region44: #{tpu_custom_call.1} parent=1 // pred_region
      %79 = dma.done [#allocation9], 1024
    $region45: #{tpu_custom_call.1} parent=1 // pred_fallthru
      _
    %v81 = vld [vmem:[#allocation2] sm:$0xf]
    %v82 = vld [vmem:[#allocation5] sm:$0xff]
    %v83 = vld [vmem:[#allocation5 + $0x8] sm:$0xff]
    %v84 = vld [vmem:[#allocation5 + $0x10] sm:$0x33]
    %v85 = vld [vmem:[%s2] sm:$0x3]
    %v87 = vlaneseq
    %v88 = vshrl.u32 %v87, 7
    %v89 = vsub.s32 0, %v88
    %v90 = vrot.slane %v85, %v89
    %v91 = vlaneseq
    %v92 = vshrl.u32 %v91, 7
    %v93 = vsub.s32 1, %v92
    %v94 = vrot.slane %v85, %v93
    %v100 = vunpack.c.l.b16 %v82
    %v101 = vunpack.c.h.b16 %v82
    %v102 = vunpack.c.l.b16 %v83
    %v103 = vunpack.c.h.b16 %v83
    %v104 = vunpack.c.l.b16 %v84
    %v105 = vunpack.c.h.b16 %v84
    %v106 = vpack.c.b16 %v102, %v100
    %v107 = vpack.c.b16 %v103, %v101
    %v108 = vpack.c.b16 %v104, %v104
    %v109 = vpack.c.b16 %v105, %v105
    %vm112 = vcmask 162816
    %v114 = vsel %vm112, %v81, 0
    %vm116 = vcmask 1041408
    %v118 = vsel %vm116, %v108, 0
    %v121 = vsel %vm116, %v109, 0
    %123 = vmatprep.subr.bf16.mxu0 %v107
    %124 = vmatpush1.bf16.msra.mxu0 %v106
    %125 = vmatprep.subr.bf16.mxu0 %v121
    %126 = vmatpush1.bf16.msra.mxu0 %v118
    %127 = vmatprep.subr.bf16.mxu0 0
    %128 = vmatpush1.bf16.msra.mxu0 0
    %129 = vmatprep.subr.bf16.mxu0 0
    %130 = vmatpush1.bf16.msra.mxu0 0
    %131 = vmatprep.subr.bf16.mxu0 0
    %132 = vmatpush1.bf16.msra.mxu0 0
    %133 = vmatprep.subr.bf16.mxu0 0
    %134 = vmatpush1.bf16.msra.mxu0 0
    %135 = vmatprep.subr.bf16.mxu0 0
    %136 = vmatpush1.bf16.msra.mxu0 0
    %137 = vmatprep.subr.bf16.mxu0 0
    %138 = vmatpush1.bf16.msra.mxu0 0
    %139 = vmatprep.subr.bf16.mxu0 0
    %140 = vmatpush1.bf16.msra.mxu0 0
    %141 = vmatprep.subr.bf16.mxu0 0
    %142 = vmatpush1.bf16.msra.mxu0 0
    %143 = vmatprep.subr.bf16.mxu0 0
    %144 = vmatpush1.bf16.msra.mxu0 0
    %145 = vmatprep.subr.bf16.mxu0 0
    %146 = vmatpush1.bf16.msra.mxu0 0
    %147 = vmatprep.subr.bf16.mxu0 0
    %148 = vmatpush1.bf16.msra.mxu0 0
    %149 = vmatprep.subr.bf16.mxu0 0
    %150 = vmatpush1.bf16.msra.mxu0 0
    %151 = vmatprep.subr.bf16.mxu0 0
    %152 = vmatpush1.bf16.msra.mxu0 0
    %153 = vmatprep.subr.bf16.mxu0 0
    %154 = vmatpush1.bf16.msra.mxu0 0
    %155 = vmatprep.mubr.bf16.mxu0 0
    %156 = vmatmul.mubr.bf16.gmra.mrb[0].mxu0 %v114
    %v157 = vpop.f32.mrb[0].mxu0
    %v158 = vadd.f32 %v90, %v157
    %v159 = vpop.f32.mrb[0].mxu0
    %v160 = vadd.f32 %v94, %v159
    %v161 = vpop.f32.mrb[0].mxu0
    %v162 = vpop.f32.mrb[0].mxu0
    %163 = vdwg.mxu0
    %vm164 = vcmp.gt.f32.partialorder %v158, 0.0
    %vm165 = vcmp.gt.f32.partialorder %v160, 0.0
    %v166 = vmul.f32 %v158, 0.01
    %v167 = vmul.f32 %v160, 0.01
    %v168 = vsel %vm164, %v158, %v166
    %v169 = vsel %vm165, %v160, %v167
    %v170 = vmul.f32 %v168, %v169
    %v171 = vpack.c.bf16 %v170, %v170
    %v172 = vld [vmem:[#allocation7] sm:$0xf]
    %v173 = vld [vmem:[#allocation7 + $0x4] sm:$0xf]
    %v174 = vld [vmem:[#allocation7 + $0x8] sm:$0xf]
    %v175 = vld [vmem:[#allocation7 + $0xc] sm:$0xf]
    %v176 = vld [vmem:[#allocation7 + $0x10] sm:$0xf]
    %v177 = vld [vmem:[#allocation7 + $0x14] sm:$0xf]
    %v178 = vld [vmem:[#allocation7 + $0x18] sm:$0xf]
    %v179 = vld [vmem:[#allocation7 + $0x1c] sm:$0xf]
    %v180 = vld [vmem:[#allocation7 + $0x20] sm:$0xf]
    %v181 = vld [vmem:[#allocation7 + $0x24] sm:$0xf]
    %v182 = vld [vmem:[#allocation7 + $0x28] sm:$0xf]
    %v183 = vld [vmem:[#allocation7 + $0x2c] sm:$0xf]
    %v184 = vld [vmem:[#allocation7 + $0x30] sm:$0xf]
    %v185 = vld [vmem:[#allocation7 + $0x34] sm:$0xf]
    %v186 = vld [vmem:[#allocation7 + $0x38] sm:$0xf]
    %v187 = vld [vmem:[#allocation7 + $0x3c] sm:$0xf]
    %v188 = vld [vmem:[%s4] sm:$0x1]
    %v190 = vlaneseq
    %v191 = vshrl.u32 %v190, 7
    %v192 = vsub.s32 0, %v191
    %v193 = vrot.slane %v188, %v192
    %v211 = vunpack.c.l.b16 %v172
    %v212 = vunpack.c.l.b16 %v173
    %v213 = vunpack.c.l.b16 %v174
    %v214 = vunpack.c.l.b16 %v175
    %v215 = vunpack.c.l.b16 %v176
    %v216 = vunpack.c.l.b16 %v177
    %v217 = vunpack.c.l.b16 %v178
    %v218 = vunpack.c.l.b16 %v179
    %v219 = vunpack.c.l.b16 %v180
    %v220 = vunpack.c.l.b16 %v181
    %v221 = vunpack.c.l.b16 %v182
    %v222 = vunpack.c.l.b16 %v183
    %v223 = vunpack.c.l.b16 %v184
    %v224 = vunpack.c.l.b16 %v185
    %v225 = vunpack.c.l.b16 %v186
    %v226 = vunpack.c.l.b16 %v187
    %v227 = vpack.c.b16 %v212, %v211
    %v228 = vpack.c.b16 %v214, %v213
    %v229 = vpack.c.b16 %v216, %v215
    %v230 = vpack.c.b16 %v218, %v217
    %v231 = vpack.c.b16 %v220, %v219
    %v232 = vpack.c.b16 %v222, %v221
    %v233 = vpack.c.b16 %v224, %v223
    %v234 = vpack.c.b16 %v226, %v225
    %243 = vmatprep.subr.bf16.mxu0 0
    %244 = vmatpush1.bf16.msra.mxu0 %v227
    %245 = vmatprep.subr.bf16.mxu0 0
    %246 = vmatpush1.bf16.msra.mxu0 %v228
    %247 = vmatprep.subr.bf16.mxu0 0
    %248 = vmatpush1.bf16.msra.mxu0 %v229
    %249 = vmatprep.subr.bf16.mxu0 0
    %250 = vmatpush1.bf16.msra.mxu0 %v230
    %251 = vmatprep.subr.bf16.mxu0 0
    %252 = vmatpush1.bf16.msra.mxu0 %v231
    %253 = vmatprep.subr.bf16.mxu0 0
    %254 = vmatpush1.bf16.msra.mxu0 %v232
    %255 = vmatprep.subr.bf16.mxu0 0
    %256 = vmatpush1.bf16.msra.mxu0 %v233
    %257 = vmatprep.subr.bf16.mxu0 0
    %258 = vmatpush1.bf16.msra.mxu0 %v234
    %259 = vmatprep.subr.bf16.mxu0 0
    %260 = vmatpush1.bf16.msra.mxu0 0
    %261 = vmatprep.subr.bf16.mxu0 0
    %262 = vmatpush1.bf16.msra.mxu0 0
    %263 = vmatprep.subr.bf16.mxu0 0
    %264 = vmatpush1.bf16.msra.mxu0 0
    %265 = vmatprep.subr.bf16.mxu0 0
    %266 = vmatpush1.bf16.msra.mxu0 0
    %267 = vmatprep.subr.bf16.mxu0 0
    %268 = vmatpush1.bf16.msra.mxu0 0
    %269 = vmatprep.subr.bf16.mxu0 0
    %270 = vmatpush1.bf16.msra.mxu0 0
    %271 = vmatprep.subr.bf16.mxu0 0
    %272 = vmatpush1.bf16.msra.mxu0 0
    %273 = vmatprep.subr.bf16.mxu0 0
    %274 = vmatpush1.bf16.msra.mxu0 0
    %275 = vmatprep.mubr.bf16.mxu0 0
    %276 = vmatmul.mubr.bf16.gmra.mrb[0].mxu0 %v171
    %v277 = vpop.f32.mrb[0].mxu0
    %v278 = vadd.f32 %v193, %v277
    %v279 = vpop.f32.mrb[0].mxu0
    %v280 = vpop.f32.mrb[0].mxu0
    %v281 = vpop.f32.mrb[0].mxu0
    %282 = vdwg.mxu0
    %v283 = vtanh.pop %v278
    %v284 = vpack.c.bf16 %v283, %v283
    %v285 = vld [vmem:[#allocation8] sm:$0xf]
    %v286 = vld [vmem:[#allocation8 + $0x4] sm:$0xf]
    %v287 = vld [vmem:[#allocation8 + $0x8] sm:$0xf]
    %v288 = vld [vmem:[#allocation8 + $0xc] sm:$0xf]
    %v289 = vld [vmem:[#allocation8 + $0x10] sm:$0xf]
    %v290 = vld [vmem:[#allocation8 + $0x14] sm:$0xf]
    %v291 = vld [vmem:[#allocation8 + $0x18] sm:$0xf]
    %v292 = vld [vmem:[#allocation8 + $0x1c] sm:$0xf]
    %v293 = vld [vmem:[#allocation8 + $0x20] sm:$0xf]
    %v294 = vld [vmem:[#allocation8 + $0x24] sm:$0xf]
    %v295 = vld [vmem:[#allocation8 + $0x28] sm:$0xf]
    %v296 = vld [vmem:[#allocation8 + $0x2c] sm:$0xf]
    %v297 = vld [vmem:[#allocation8 + $0x30] sm:$0xf]
    %v298 = vld [vmem:[#allocation8 + $0x34] sm:$0xf]
    %v299 = vld [vmem:[#allocation8 + $0x38] sm:$0xf]
    %v300 = vld [vmem:[#allocation8 + $0x3c] sm:$0xf]
    %v301 = vld [vmem:[%s6] sm:$0x1]
    %v303 = vlaneseq
    %v304 = vshrl.u32 %v303, 7
    %v305 = vsub.s32 0, %v304
    %v306 = vrot.slane %v301, %v305
    %v324 = vunpack.c.l.b16 %v285
    %v325 = vunpack.c.l.b16 %v286
    %v326 = vunpack.c.l.b16 %v287
    %v327 = vunpack.c.l.b16 %v288
    %v328 = vunpack.c.l.b16 %v289
    %v329 = vunpack.c.l.b16 %v290
    %v330 = vunpack.c.l.b16 %v291
    %v331 = vunpack.c.l.b16 %v292
    %v332 = vunpack.c.l.b16 %v293
    %v333 = vunpack.c.l.b16 %v294
    %v334 = vunpack.c.l.b16 %v295
    %v335 = vunpack.c.l.b16 %v296
    %v336 = vunpack.c.l.b16 %v297
    %v337 = vunpack.c.l.b16 %v298
    %v338 = vunpack.c.l.b16 %v299
    %v339 = vunpack.c.l.b16 %v300
    %v340 = vpack.c.b16 %v325, %v324
    %v341 = vpack.c.b16 %v327, %v326
    %v342 = vpack.c.b16 %v329, %v328
    %v343 = vpack.c.b16 %v331, %v330
    %v344 = vpack.c.b16 %v333, %v332
    %v345 = vpack.c.b16 %v335, %v334
    %v346 = vpack.c.b16 %v337, %v336
    %v347 = vpack.c.b16 %v339, %v338
    %356 = vmatprep.subr.bf16.mxu0 0
    %357 = vmatpush1.bf16.msra.mxu0 %v340
    %358 = vmatprep.subr.bf16.mxu0 0
    %359 = vmatpush1.bf16.msra.mxu0 %v341
    %360 = vmatprep.subr.bf16.mxu0 0
    %361 = vmatpush1.bf16.msra.mxu0 %v342
    %362 = vmatprep.subr.bf16.mxu0 0
    %363 = vmatpush1.bf16.msra.mxu0 %v343
    %364 = vmatprep.subr.bf16.mxu0 0
    %365 = vmatpush1.bf16.msra.mxu0 %v344
    %366 = vmatprep.subr.bf16.mxu0 0
    %367 = vmatpush1.bf16.msra.mxu0 %v345
    %368 = vmatprep.subr.bf16.mxu0 0
    %369 = vmatpush1.bf16.msra.mxu0 %v346
    %370 = vmatprep.subr.bf16.mxu0 0
    %371 = vmatpush1.bf16.msra.mxu0 %v347
    %372 = vmatprep.subr.bf16.mxu0 0
    %373 = vmatpush1.bf16.msra.mxu0 0
    %374 = vmatprep.subr.bf16.mxu0 0
    %375 = vmatpush1.bf16.msra.mxu0 0
    %376 = vmatprep.subr.bf16.mxu0 0
    %377 = vmatpush1.bf16.msra.mxu0 0
    %378 = vmatprep.subr.bf16.mxu0 0
    %379 = vmatpush1.bf16.msra.mxu0 0
    %380 = vmatprep.subr.bf16.mxu0 0
    %381 = vmatpush1.bf16.msra.mxu0 0
    %382 = vmatprep.subr.bf16.mxu0 0
    %383 = vmatpush1.bf16.msra.mxu0 0
    %384 = vmatprep.subr.bf16.mxu0 0
    %385 = vmatpush1.bf16.msra.mxu0 0
    %386 = vmatprep.subr.bf16.mxu0 0
    %387 = vmatpush1.bf16.msra.mxu0 0
    %388 = vmatprep.mubr.bf16.mxu0 0
    %389 = vmatmul.mubr.bf16.gmra.mrb[0].mxu0 %v284
    %v390 = vpop.f32.mrb[0].mxu0
    %v391 = vadd.f32 %v306, %v390
    %v392 = vpop.f32.mrb[0].mxu0
    %v393 = vpop.f32.mrb[0].mxu0
    %v394 = vpop.f32.mrb[0].mxu0
    %395 = vdwg.mxu0
    %v396 = vlaneseq
    %v397 = vand.u32 %v396, 127
    %vm398 = vcmp.lt.s32.totalorder %v397, 4
    %v399 = vsel %vm398, %v391, -1e+30
    %400 = vmax.xlane.f32.xlu0 %v399
    %v401 = vpop.xlane.xlu0 %400
    %v402 = vsub.f32 %v399, %v401
    %v403 = vmul.f32 %v402, 1.442695
    %v404 = vpow.pop %v403
    %405 = vadd.xlane.f32.xlu0 %v404
    %v406 = vpop.xlane.xlu0 %405
    %v407 = vrcp.pop %v406
    %v408 = vmul.f32 %v404, %v407
    %409 = vst [vmem:[#allocation10] sm:$0xff] %v408
    // Predicated region
    $region46: #{tpu_custom_call.1} parent=1 // pred_check
      _
    $region47: #{tpu_custom_call.1} parent=1 // pred_check_branch
      %411 = sbr.rel (0) target = $region49
    $region48: #{tpu_custom_call.1} parent=1 // pred_region
      %s413 = ssub.s32 128, 128
      %414 = vsyncadd [#allocation4], %s413
      %s416 = sshll.u32 [#allocation10], 4
      %s417 = int_to_ptr.vmem [resolvable:$true] %s416
      %419 = dma.vmem_to_hbm [thread:$0]  %s417, 128, %s7, [#allocation4]
    $region49: #{tpu_custom_call.1} parent=1 // pred_fallthru
      _
    // Predicated region
    $region50: #{tpu_custom_call.1} parent=1 // pred_check
      _
    $region51: #{tpu_custom_call.1} parent=1 // pred_check_branch
      %421 = sbr.rel (0) target = $region53
    $region52: #{tpu_custom_call.1} parent=1 // pred_region
      %422 = dma.done [#allocation4], 128
    $region53: #{tpu_custom_call.1} parent=1 // pred_fallthru
      _
    %423 = vsyncpa [#allocation3], 1
    %424 = vsyncpa [#allocation6], 1
    %425 = vsyncpa [#allocation9], 1
    %426 = vsyncpa [#allocation4], 1

</llo_original>
